<compile_context>
chip_gen: v7x
topology: tpu7x:2x2x1
jax: 0.10.0
libtpu: 0.0.40
codegen_flags: <defaults>
</compile_context>

<pallas_src>
import functools

import jax
import jax.numpy as jnp
from jax import lax
from jax.experimental import pallas as pl
from jax.experimental.pallas import tpu as pltpu


def _pick_hw_tile(hw, batch):
    """Largest lane-dense (multiple-of-128) tile of the flattened spatial axis.

    Prefers a tiling that gives the parallel grid >= 2 steps (v7x megacore); falls back to a
    single full-extent block (always a legal BlockSpec) when H*W is not a multiple of 128."""
    for cand in (512, 256, 128):
        if hw % cand == 0:
            if batch * (hw // cand) >= 2 or cand == 128:
                return cand
    return hw


def _vmem_limit(need_bytes):
    # generous headroom, never below the most conservative default (16 MiB), capped at 48 MiB
    return int(min(48 * 1024 * 1024, max(2 * need_bytes + (4 << 20), 16 * 1024 * 1024)))


# ---------------------------------------------------------------------------
# Pallas kernels
# ---------------------------------------------------------------------------
def _dsc_conv_gn_stats_kernel(s_ref, w_ref, b_ref, y_ref, s1_ref, s2_ref, acc_ref, *, ktaps):
    """Snake conv for one (batch, spatial tile): y = sum_k W_k @ S_k + bias, channel-major.

    s_ref : (1, K, C, hw_t) bf16     w_ref : (K, Cout, C) bf16     b_ref : (Cout, 1) f32
    y_ref : (1, Cout, hw_t) bf16     s1/s2 : (1, 1, Cout, 1) f32 per-tile GroupNorm partial sums
    acc   : (Cout, hw_t) f32 VMEM accumulator
    """
    acc_ref[...] = jnp.dot(w_ref[0], s_ref[0, 0], preferred_element_type=jnp.float32)
    for k in range(1, ktaps):                       # static unroll over the K taps
        acc_ref[...] += jnp.dot(w_ref[k], s_ref[0, k], preferred_element_type=jnp.float32)
    v = acc_ref[...] + b_ref[...]                   # (Cout, hw_t) f32 epilogue
    y_ref[0] = v.astype(y_ref.dtype)
    # fused per-channel partial statistics for GroupNorm (avoids a full re-read of y from HBM)
    s1_ref[0, 0] = jnp.sum(v, axis=1, keepdims=True)
    s2_ref[0, 0] = jnp.sum(v * v, axis=1, keepdims=True)


def pallas_dsc_conv_gn_stats(sampled, w_k, bias):
    """sampled (B, K, C, HW) bf16;  w_k (K, Cout, C) bf16;  bias (Cout,) f32.

    Returns y (B, Cout, HW) bf16 and per-tile per-channel partial (s1, s2) of shape (B, n_hw, Cout)."""
    B, K, C, HW = sampled.shape
    Cout = w_k.shape[1]
    hw_t = _pick_hw_tile(HW, B)
    n_hw = HW // hw_t
    bias2 = bias.astype(jnp.float32).reshape(Cout, 1)

    vmem_need = (2 * K * C * hw_t * 2          # sampled blocks (double-buffered, bf16)
                 + 2 * K * Cout * C * 2        # weights (constant block, counted twice anyway)
                 + 2 * Cout * 4                # bias
                 + 2 * Cout * hw_t * 2         # y output blocks (bf16)
                 + 8 * Cout * 4                # stats output blocks
                 + Cout * hw_t * 4)            # f32 accumulator scratch

    kernel = functools.partial(_dsc_conv_gn_stats_kernel, ktaps=K)
    y, s1, s2 = pl.pallas_call(
        kernel,
        out_shape=(
            jax.ShapeDtypeStruct((B, Cout, HW), jnp.bfloat16),
            jax.ShapeDtypeStruct((B, n_hw, Cout, 1), jnp.float32),
            jax.ShapeDtypeStruct((B, n_hw, Cout, 1), jnp.float32),
        ),
        grid=(B, n_hw),
        in_specs=[
            pl.BlockSpec((1, K, C, hw_t), lambda b, t: (b, 0, 0, t)),
            pl.BlockSpec((K, Cout, C), lambda b, t: (0, 0, 0)),
            pl.BlockSpec((Cout, 1), lambda b, t: (0, 0)),
        ],
        out_specs=(
            pl.BlockSpec((1, Cout, hw_t), lambda b, t: (b, 0, t)),
            pl.BlockSpec((1, 1, Cout, 1), lambda b, t: (b, t, 0, 0)),
            pl.BlockSpec((1, 1, Cout, 1), lambda b, t: (b, t, 0, 0)),
        ),
        scratch_shapes=[pltpu.VMEM((Cout, hw_t), jnp.float32)],
        compiler_params=pltpu.CompilerParams(
            dimension_semantics=("parallel", "parallel"),
            vmem_limit_bytes=_vmem_limit(vmem_need),
        ),
    )(sampled, w_k, bias2)
    return y, s1[..., 0], s2[..., 0]


def _gn_norm_relu_kernel(y_ref, sc_ref, sh_ref, o_ref):
    """Per-channel affine (GroupNorm scale/shift) + ReLU on one (Cout, hw_t) tile."""
    x = y_ref[0].astype(jnp.float32)                       # (Cout, hw_t)
    o_ref[0] = jnp.maximum(x * sc_ref[0] + sh_ref[0], 0.0)


def pallas_gn_norm_relu(y, scale, shift):
    """y (B, Cout, HW) bf16;  scale/shift (B, Cout) f32.  Returns f32 (B, Cout, HW) (already NCHW)."""
    B, Cout, HW = y.shape
    hw_t = _pick_hw_tile(HW, B)
    n_hw = HW // hw_t
    sc = scale.reshape(B, Cout, 1).astype(jnp.float32)
    sh = shift.reshape(B, Cout, 1).astype(jnp.float32)
    vmem_need = 2 * Cout * hw_t * 2 + 4 * Cout * 4 + 2 * Cout * hw_t * 4
    return pl.pallas_call(
        _gn_norm_relu_kernel,
        out_shape=jax.ShapeDtypeStruct((B, Cout, HW), jnp.float32),
        grid=(B, n_hw),
        in_specs=[
            pl.BlockSpec((1, Cout, hw_t), lambda b, t: (b, 0, t)),
            pl.BlockSpec((1, Cout, 1), lambda b, t: (b, 0, 0)),
            pl.BlockSpec((1, Cout, 1), lambda b, t: (b, 0, 0)),
        ],
        out_specs=pl.BlockSpec((1, Cout, hw_t), lambda b, t: (b, 0, t)),
        compiler_params=pltpu.CompilerParams(
            dimension_semantics=("parallel", "parallel"),
            vmem_limit_bytes=_vmem_limit(vmem_need),
        ),
    )(y, sc, sh)


# ---------------------------------------------------------------------------
# Module forward
# ---------------------------------------------------------------------------
def init_params(key, in_planes, out_planes, kernel_size):
    K = kernel_size
    ks = jax.random.split(key, 4)
    return dict(
        w_off=0.1 * jax.random.normal(ks[0], (2 * K, in_planes, 3, 3), jnp.float32),
        b_off=0.1 * jax.random.normal(ks[1], (2 * K,), jnp.float32),
        bn_gamma=jnp.ones((2 * K,), jnp.float32),
        bn_beta=jnp.zeros((2 * K,), jnp.float32),
        w_dsc=0.1 * jax.random.normal(ks[2], (out_planes, in_planes, K), jnp.float32),
        b_dsc=0.1 * jax.random.normal(ks[3], (out_planes,), jnp.float32),
        gn_gamma=jnp.ones((out_planes,), jnp.float32),
        gn_beta=jnp.zeros((out_planes,), jnp.float32),
    )


def single_conv3d_block_dsc(params, x, kernel_size, morph, extend_scope=1.0, if_offset=True):
    B, C, H, W = x.shape
    K = kernel_size
    center = K // 2
    out_planes = params["w_dsc"].shape[0]
    HW = H * W
    assert out_planes % 4 == 0, "GroupNorm(out_planes // 4) requires out_planes % 4 == 0"
    assert K % 2 == 1, "DSConv uses an odd kernel size (taps are integer offsets)"

    xf = x.astype(jnp.float32)                              # stays NCHW the whole way

    # ---- offset branch: 3x3 conv (XLA conv; no materialized im2col) + BatchNorm + tanh ----
    off = lax.conv_general_dilated(
        xf, params["w_off"], window_strides=(1, 1), padding=((1, 1), (1, 1)),
        dimension_numbers=("NCHW", "OIHW", "NCHW"), preferred_element_type=jnp.float32,
    ) + params["b_off"].reshape(1, -1, 1, 1)
    # BatchNorm2d with training-mode batch statistics (per channel over B, H, W), then tanh.
    mean = jnp.mean(off, axis=(0, 2, 3), keepdims=True)
    var = jnp.mean(jnp.square(off - mean), axis=(0, 2, 3), keepdims=True)
    off = (off - mean) * lax.rsqrt(var + 1e-5)
    off = off * params["bn_gamma"].reshape(1, -1, 1, 1) + params["bn_beta"].reshape(1, -1, 1, 1)
    off = jnp.tanh(off)
    y_off = off[:, :K]                                      # (B, K, H, W)
    x_off = off[:, K:]

    # ---- snake coordinate map (DSC._coordinate_map_3D), channel-first ----
    def accumulate(off_k):            # iterative "swing" accumulation from the center tap
        new = [off_k[:, k] for k in range(K)]
        new[center] = jnp.zeros_like(new[center])
        for idx in range(1, center):  # reference-implementation quirk: range(1, center)
            new[center + idx] = new[center + idx - 1] + off_k[:, center + idx]
            new[center - idx] = new[center - idx + 1] + off_k[:, center - idx]
        return jnp.stack(new, axis=1)                       # (B, K, H, W)

    taps_i = jnp.arange(K, dtype=jnp.int32) - center        # integer taps (odd K)

    # One coordinate axis is exactly integer per morph, so the reference bilinear interpolation
    # (with its border-clamping quirk) reduces exactly to lat * (w0 * f[c0] + w1 * f[c1]):
    # 2 gathers per tap instead of 4.
    if morph == 0:
        # kernel spreads along x (integer: w + tap); deformation swings in y (fractional)
        frac = jnp.broadcast_to(jnp.arange(H, dtype=jnp.float32)[None, None, :, None], (B, K, H, W))
        if if_offset:
            frac = frac + extend_scope * accumulate(y_off)
        xi = jnp.arange(W, dtype=jnp.int32)[None, :] + taps_i[:, None]          # (K, W)
        int_idx = jnp.clip(xi, 0, W - 1)[None, :, None, :]                      # (1, K, 1, W)
        lat_b = (jnp.clip(xi + 1, 0, W) - jnp.clip(xi, 0, W)).astype(jnp.float32)[None, :, None, :]
        f0 = jnp.floor(frac)
        f0i = f0.astype(jnp.int32)
        c0 = jnp.clip(f0i, 0, H - 1)
        c1 = jnp.clip(f0i + 1, 0, H - 1)
        w0 = (jnp.clip(f0 + 1.0, 0.0, float(H)) - frac) * lat_b
        w1 = (frac - jnp.clip(f0, 0.0, float(H))) * lat_b
        idx0 = c0 * W + int_idx
        idx1 = c1 * W + int_idx
    else:
        # kernel spreads along y (integer: h + tap); deformation swings in x (fractional)
        frac = jnp.broadcast_to(jnp.arange(W, dtype=jnp.float32)[None, None, None, :], (B, K, H, W))
        if if_offset:
            frac = frac + extend_scope * accumulate(x_off)
        yi = jnp.arange(H, dtype=jnp.int32)[None, :] + taps_i[:, None]          # (K, H)
        int_idx = jnp.clip(yi, 0, H - 1)[None, :, :, None]                      # (1, K, H, 1)
        lat_b = (jnp.clip(yi + 1, 0, H) - jnp.clip(yi, 0, H)).astype(jnp.float32)[None, :, :, None]
        f0 = jnp.floor(frac)
        f0i = f0.astype(jnp.int32)
        c0 = jnp.clip(f0i, 0, W - 1)
        c1 = jnp.clip(f0i + 1, 0, W - 1)
        w0 = (jnp.clip(f0 + 1.0, 0.0, float(W)) - frac) * lat_b
        w1 = (frac - jnp.clip(f0, 0.0, float(W))) * lat_b
        idx0 = int_idx * W + c0
        idx1 = int_idx * W + c1

    idx0 = idx0.reshape(B, K, HW)
    idx1 = idx1.reshape(B, K, HW)
    w0 = w0.reshape(B, K, HW)
    w1 = w1.reshape(B, K, HW)

    # ---- deformable sampling: 2 gathers per tap from a bf16 copy, output already in the
    #      (B, K, C, HW) bf16 layout the Pallas conv kernel consumes (no extra cast pass) ----
    # TODO(synk): the gathers themselves remain XLA (jnp.take_along_axis); a scalar-prefetch /
    #             DMA-gather Pallas kernel could cut their latency further but is far less robust.
    feat = xf.reshape(B, C, HW).astype(jnp.bfloat16)
    per_tap = []
    for k in range(K):
        g0 = jnp.take_along_axis(feat, idx0[:, k][:, None, :], axis=2, mode="clip")  # (B, C, HW)
        g1 = jnp.take_along_axis(feat, idx1[:, k][:, None, :], axis=2, mode="clip")
        val = w0[:, k][:, None, :] * g0 + w1[:, k][:, None, :] * g1                  # f32 math
        per_tap.append(val.astype(jnp.bfloat16))
    sampled = jnp.stack(per_tap, axis=1)                    # (B, K, C, HW) bf16

    # ---- snake conv + fused per-tile GroupNorm statistics (Pallas, channel-major) ----
    w_k = jnp.transpose(params["w_dsc"], (2, 0, 1)).astype(jnp.bfloat16)   # (K, Cout, C)
    y, s1, s2 = pallas_dsc_conv_gn_stats(sampled, w_k, params["b_dsc"])

    # ---- GroupNorm(out_planes // 4): tiny per-(batch, group) combine in plain XLA ----
    G = out_planes // 4
    cg = out_planes // G
    cnt = float(cg * HW)
    s1g = jnp.sum(s1.reshape(B, -1, G, cg), axis=(1, 3))    # (B, G)
    s2g = jnp.sum(s2.reshape(B, -1, G, cg), axis=(1, 3))
    mean_g = s1g / cnt
    var_g = jnp.maximum(s2g / cnt - mean_g * mean_g, 0.0)
    inv_g = lax.rsqrt(var_g + 1e-5)
    mean_c = jnp.repeat(mean_g, cg, axis=1)                 # (B, Cout)
    inv_c = jnp.repeat(inv_g, cg, axis=1)
    scale = inv_c * params["gn_gamma"][None, :]
    shift = params["gn_beta"][None, :] - mean_c * scale

    # ---- normalize + ReLU (Pallas); output is already NCHW -> metadata reshape only ----
    out = pallas_gn_norm_relu(y, scale, shift)
    return out.reshape(B, out_planes, H, W)


if __name__ == "__main__":
    B, C, H, W = 2, 4, 16, 16
    out_planes, K = 8, 3

    key = jax.random.PRNGKey(0)
    kx, kp = jax.random.split(key)
    x = jax.random.normal(kx, (B, C, H, W), jnp.float32)
    params = init_params(kp, C, out_planes, K)

    for morph in (0, 1):
        fwd = jax.jit(functools.partial(single_conv3d_block_dsc, kernel_size=K, morph=morph))
        y = fwd(params, x)
        jax.block_until_ready(y)
        assert y.shape == (B, out_planes, H, W)
        assert bool(jnp.all(jnp.isfinite(y)))
    print("KERNEL_OK")
</pallas_src>

<mosaic_0001>
module attributes {stable_mosaic.version = 11 : i64} {
  func.func @_dsc_conv_gn_stats_kernel(%arg0: i32, %arg1: i32, %arg2: memref<1x3x4x256xbf16, #tpu.memory_space<vmem>>, %arg3: memref<3x8x4xbf16, #tpu.memory_space<vmem>>, %arg4: memref<8x1xf32, #tpu.memory_space<vmem>>, %arg5: memref<1x8x256xbf16, #tpu.memory_space<vmem>>, %arg6: memref<1x1x8x1xf32, #tpu.memory_space<vmem>>, %arg7: memref<1x1x8x1xf32, #tpu.memory_space<vmem>>, %arg8: memref<8x256xf32, #tpu.memory_space<vmem>>) attributes {dimension_semantics = [#tpu.dimension_semantics<parallel>, #tpu.dimension_semantics<parallel>], iteration_bounds = array<i64: 2, 1>, scalar_prefetch = 0 : i64, scratch_operands = 1 : i64, tpu.core_type = #tpu.core_type<tc>, window_params = [{transform_indices = @transform_0, window_bounds = array<i64: 1, 3, 4, 256>}, {pipeline_mode = #tpu.pipeline_mode<synchronous>, transform_indices = @transform_1, window_bounds = array<i64: 3, 8, 4>}, {pipeline_mode = #tpu.pipeline_mode<synchronous>, transform_indices = @transform_2, window_bounds = array<i64: 8, 1>}, {transform_indices = @transform_3, window_bounds = array<i64: 1, 8, 256>}, {transform_indices = @transform_4, window_bounds = array<i64: 1, 1, 8, 1>}, {transform_indices = @transform_5, window_bounds = array<i64: 1, 1, 8, 1>}]} {
    %c0 = arith.constant 0 : index
    %c0_0 = arith.constant 0 : index
    %c0_1 = arith.constant 0 : index
    %0 = vector.load %arg3[%c0, %c0_0, %c0_1] : memref<3x8x4xbf16, #tpu.memory_space<vmem>>, vector<1x8x4xbf16>
    %1 = vector.shape_cast %0 : vector<1x8x4xbf16> to vector<8x4xbf16>
    %c0_2 = arith.constant 0 : index
    %c0_3 = arith.constant 0 : index
    %c0_4 = arith.constant 0 : index
    %c0_5 = arith.constant 0 : index
    %2 = vector.load %arg2[%c0_2, %c0_3, %c0_4, %c0_5] : memref<1x3x4x256xbf16, #tpu.memory_space<vmem>>, vector<1x1x4x256xbf16>
    %3 = vector.shape_cast %2 : vector<1x1x4x256xbf16> to vector<4x256xbf16>
    %cst = arith.constant dense<0.000000e+00> : vector<8x256xf32>
    %4 = tpu.matmul %1, %3, %cst {dimension_numbers = #tpu.dot_dimension_numbers<[1], [0], [0], [1], [0, 0, 1, 1], [], []>} : vector<8x4xbf16>, vector<4x256xbf16>, vector<8x256xf32> -> vector<8x256xf32>
    %c0_6 = arith.constant 0 : index
    %c0_7 = arith.constant 0 : index
    %5 = vector.load %arg8[%c0_6, %c0_7] : memref<8x256xf32, #tpu.memory_space<vmem>>, vector<8x256xf32>
    tpu.vector_store %arg8[%c0_6, %c0_7], %4 {strides = array<i32>} : memref<8x256xf32, #tpu.memory_space<vmem>>, vector<8x256xf32>,
    %c0_8 = arith.constant 0 : index
    %c0_9 = arith.constant 0 : index
    %6 = vector.load %arg8[%c0_8, %c0_9] : memref<8x256xf32, #tpu.memory_space<vmem>>, vector<8x256xf32>
    %c1 = arith.constant 1 : index
    %c0_10 = arith.constant 0 : index
    %c0_11 = arith.constant 0 : index
    %7 = vector.load %arg3[%c1, %c0_10, %c0_11] : memref<3x8x4xbf16, #tpu.memory_space<vmem>>, vector<1x8x4xbf16>
    %8 = vector.shape_cast %7 : vector<1x8x4xbf16> to vector<8x4xbf16>
    %c0_12 = arith.constant 0 : index
    %c1_13 = arith.constant 1 : index
    %c0_14 = arith.constant 0 : index
    %c0_15 = arith.constant 0 : index
    %9 = vector.load %arg2[%c0_12, %c1_13, %c0_14, %c0_15] : memref<1x3x4x256xbf16, #tpu.memory_space<vmem>>, vector<1x1x4x256xbf16>
    %10 = vector.shape_cast %9 : vector<1x1x4x256xbf16> to vector<4x256xbf16>
    %cst_16 = arith.constant dense<0.000000e+00> : vector<8x256xf32>
    %11 = tpu.matmul %8, %10, %cst_16 {dimension_numbers = #tpu.dot_dimension_numbers<[1], [0], [0], [1], [0, 0, 1, 1], [], []>} : vector<8x4xbf16>, vector<4x256xbf16>, vector<8x256xf32> -> vector<8x256xf32>
    %12 = arith.addf %6, %11 : vector<8x256xf32>
    %c0_17 = arith.constant 0 : index
    %c0_18 = arith.constant 0 : index
    %13 = vector.load %arg8[%c0_17, %c0_18] : memref<8x256xf32, #tpu.memory_space<vmem>>, vector<8x256xf32>
    tpu.vector_store %arg8[%c0_17, %c0_18], %12 {strides = array<i32>} : memref<8x256xf32, #tpu.memory_space<vmem>>, vector<8x256xf32>,
    %c0_19 = arith.constant 0 : index
    %c0_20 = arith.constant 0 : index
    %14 = vector.load %arg8[%c0_19, %c0_20] : memref<8x256xf32, #tpu.memory_space<vmem>>, vector<8x256xf32>
    %c2 = arith.constant 2 : index
    %c0_21 = arith.constant 0 : index
    %c0_22 = arith.constant 0 : index
    %15 = vector.load %arg3[%c2, %c0_21, %c0_22] : memref<3x8x4xbf16, #tpu.memory_space<vmem>>, vector<1x8x4xbf16>
    %16 = vector.shape_cast %15 : vector<1x8x4xbf16> to vector<8x4xbf16>
    %c0_23 = arith.constant 0 : index
    %c2_24 = arith.constant 2 : index
    %c0_25 = arith.constant 0 : index
    %c0_26 = arith.constant 0 : index
    %17 = vector.load %arg2[%c0_23, %c2_24, %c0_25, %c0_26] : memref<1x3x4x256xbf16, #tpu.memory_space<vmem>>, vector<1x1x4x256xbf16>
    %18 = vector.shape_cast %17 : vector<1x1x4x256xbf16> to vector<4x256xbf16>
    %cst_27 = arith.constant dense<0.000000e+00> : vector<8x256xf32>
    %19 = tpu.matmul %16, %18, %cst_27 {dimension_numbers = #tpu.dot_dimension_numbers<[1], [0], [0], [1], [0, 0, 1, 1], [], []>} : vector<8x4xbf16>, vector<4x256xbf16>, vector<8x256xf32> -> vector<8x256xf32>
    %20 = arith.addf %14, %19 : vector<8x256xf32>
    %c0_28 = arith.constant 0 : index
    %c0_29 = arith.constant 0 : index
    %21 = vector.load %arg8[%c0_28, %c0_29] : memref<8x256xf32, #tpu.memory_space<vmem>>, vector<8x256xf32>
    tpu.vector_store %arg8[%c0_28, %c0_29], %20 {strides = array<i32>} : memref<8x256xf32, #tpu.memory_space<vmem>>, vector<8x256xf32>,
    %c0_30 = arith.constant 0 : index
    %c0_31 = arith.constant 0 : index
    %22 = vector.load %arg8[%c0_30, %c0_31] : memref<8x256xf32, #tpu.memory_space<vmem>>, vector<8x256xf32>
    %c0_32 = arith.constant 0 : index
    %c0_33 = arith.constant 0 : index
    %23 = vector.load %arg4[%c0_32, %c0_33] : memref<8x1xf32, #tpu.memory_space<vmem>>, vector<8x1xf32>
    %24 = vector.broadcast %23 : vector<8x1xf32> to vector<8x256xf32>
    %25 = arith.addf %22, %24 : vector<8x256xf32>
    %26 = arith.truncf %25 : vector<8x256xf32> to vector<8x256xbf16>
    %c0_34 = arith.constant 0 : index
    %c0_35 = arith.constant 0 : index
    %c0_36 = arith.constant 0 : index
    %27 = vector.load %arg5[%c0_34, %c0_35, %c0_36] : memref<1x8x256xbf16, #tpu.memory_space<vmem>>, vector<1x8x256xbf16>
    %28 = vector.shape_cast %27 : vector<1x8x256xbf16> to vector<8x256xbf16>
    %29 = vector.shape_cast %26 : vector<8x256xbf16> to vector<1x8x256xbf16>
    tpu.vector_store %arg5[%c0_34, %c0_35, %c0_36], %29 {strides = array<i32>} : memref<1x8x256xbf16, #tpu.memory_space<vmem>>, vector<1x8x256xbf16>,
    %cst_37 = arith.constant dense<0.000000e+00> : vector<8xf32>
    %30 = vector.multi_reduction <add>, %25, %cst_37 [1] : vector<8x256xf32> to vector<8xf32>
    %31 = vector.shape_cast %30 : vector<8xf32> to vector<8x1xf32>
    %c0_38 = arith.constant 0 : index
    %c0_39 = arith.constant 0 : index
    %c0_40 = arith.constant 0 : index
    %c0_41 = arith.constant 0 : index
    %32 = vector.load %arg6[%c0_38, %c0_39, %c0_40, %c0_41] : memref<1x1x8x1xf32, #tpu.memory_space<vmem>>, vector<1x1x8x1xf32>
    %33 = vector.shape_cast %32 : vector<1x1x8x1xf32> to vector<8x1xf32>
    %34 = vector.shape_cast %31 : vector<8x1xf32> to vector<1x1x8x1xf32>
    tpu.vector_store %arg6[%c0_38, %c0_39, %c0_40, %c0_41], %34 {strides = array<i32>} : memref<1x1x8x1xf32, #tpu.memory_space<vmem>>, vector<1x1x8x1xf32>,
    %35 = arith.mulf %25, %25 : vector<8x256xf32>
    %cst_42 = arith.constant dense<0.000000e+00> : vector<8xf32>
    %36 = vector.multi_reduction <add>, %35, %cst_42 [1] : vector<8x256xf32> to vector<8xf32>
    %37 = vector.shape_cast %36 : vector<8xf32> to vector<8x1xf32>
    %c0_43 = arith.constant 0 : index
    %c0_44 = arith.constant 0 : index
    %c0_45 = arith.constant 0 : index
    %c0_46 = arith.constant 0 : index
    %38 = vector.load %arg7[%c0_43, %c0_44, %c0_45, %c0_46] : memref<1x1x8x1xf32, #tpu.memory_space<vmem>>, vector<1x1x8x1xf32>
    %39 = vector.shape_cast %38 : vector<1x1x8x1xf32> to vector<8x1xf32>
    %40 = vector.shape_cast %37 : vector<8x1xf32> to vector<1x1x8x1xf32>
    tpu.vector_store %arg7[%c0_43, %c0_44, %c0_45, %c0_46], %40 {strides = array<i32>} : memref<1x1x8x1xf32, #tpu.memory_space<vmem>>, vector<1x1x8x1xf32>,
    return
  }
  func.func @transform_0(%arg0: i32, %arg1: i32) -> (i32, i32, i32, i32) {
    %c0_i32 = arith.constant 0 : i32
    %c0_i32_0 = arith.constant 0 : i32
    %c0_i32_1 = arith.constant 0 : i32
    return %arg0, %c0_i32, %c0_i32_0, %arg1 : i32, i32, i32, i32
  }
  func.func @transform_1(%arg0: i32, %arg1: i32) -> (i32, i32, i32) {
    %c0_i32 = arith.constant 0 : i32
    %c0_i32_0 = arith.constant 0 : i32
    %c0_i32_1 = arith.constant 0 : i32
    %c0_i32_2 = arith.constant 0 : i32
    return %c0_i32, %c0_i32_0, %c0_i32_1 : i32, i32, i32
  }
  func.func @transform_2(%arg0: i32, %arg1: i32) -> (i32, i32) {
    %c0_i32 = arith.constant 0 : i32
    %c0_i32_0 = arith.constant 0 : i32
    %c0_i32_1 = arith.constant 0 : i32
    return %c0_i32, %c0_i32_0 : i32, i32
  }
  func.func @transform_3(%arg0: i32, %arg1: i32) -> (i32, i32, i32) {
    %c0_i32 = arith.constant 0 : i32
    %c0_i32_0 = arith.constant 0 : i32
    return %arg0, %c0_i32, %arg1 : i32, i32, i32
  }
  func.func @transform_4(%arg0: i32, %arg1: i32) -> (i32, i32, i32, i32) {
    %c0_i32 = arith.constant 0 : i32
    %c0_i32_0 = arith.constant 0 : i32
    %c0_i32_1 = arith.constant 0 : i32
    return %arg0, %arg1, %c0_i32, %c0_i32_0 : i32, i32, i32, i32
  }
  func.func @transform_5(%arg0: i32, %arg1: i32) -> (i32, i32, i32, i32) {
    %c0_i32 = arith.constant 0 : i32
    %c0_i32_0 = arith.constant 0 : i32
    %c0_i32_1 = arith.constant 0 : i32
    return %arg0, %arg1, %c0_i32, %c0_i32_0 : i32, i32, i32, i32
  }
}

module attributes {stable_mosaic.version = 11 : i64} {
  func.func @_gn_norm_relu_kernel(%arg0: i32, %arg1: i32, %arg2: memref<1x8x256xbf16, #tpu.memory_space<vmem>>, %arg3: memref<1x8x1xf32, #tpu.memory_space<vmem>>, %arg4: memref<1x8x1xf32, #tpu.memory_space<vmem>>, %arg5: memref<1x8x256xf32, #tpu.memory_space<vmem>>) attributes {dimension_semantics = [#tpu.dimension_semantics<parallel>, #tpu.dimension_semantics<parallel>], iteration_bounds = array<i64: 2, 1>, scalar_prefetch = 0 : i64, scratch_operands = 0 : i64, tpu.core_type = #tpu.core_type<tc>, window_params = [{transform_indices = @transform_0, window_bounds = array<i64: 1, 8, 256>}, {transform_indices = @transform_1, window_bounds = array<i64: 1, 8, 1>}, {transform_indices = @transform_2, window_bounds = array<i64: 1, 8, 1>}, {transform_indices = @transform_3, window_bounds = array<i64: 1, 8, 256>}]} {
    %c0 = arith.constant 0 : index
    %c0_0 = arith.constant 0 : index
    %c0_1 = arith.constant 0 : index
    %0 = vector.load %arg2[%c0, %c0_0, %c0_1] : memref<1x8x256xbf16, #tpu.memory_space<vmem>>, vector<1x8x256xbf16>
    %1 = vector.shape_cast %0 : vector<1x8x256xbf16> to vector<8x256xbf16>
    %2 = arith.extf %1 : vector<8x256xbf16> to vector<8x256xf32>
    %c0_2 = arith.constant 0 : index
    %c0_3 = arith.constant 0 : index
    %c0_4 = arith.constant 0 : index
    %3 = vector.load %arg3[%c0_2, %c0_3, %c0_4] : memref<1x8x1xf32, #tpu.memory_space<vmem>>, vector<1x8x1xf32>
    %4 = vector.shape_cast %3 : vector<1x8x1xf32> to vector<8x1xf32>
    %5 = vector.broadcast %4 : vector<8x1xf32> to vector<8x256xf32>
    %6 = arith.mulf %2, %5 : vector<8x256xf32>
    %c0_5 = arith.constant 0 : index
    %c0_6 = arith.constant 0 : index
    %c0_7 = arith.constant 0 : index
    %7 = vector.load %arg4[%c0_5, %c0_6, %c0_7] : memref<1x8x1xf32, #tpu.memory_space<vmem>>, vector<1x8x1xf32>
    %8 = vector.shape_cast %7 : vector<1x8x1xf32> to vector<8x1xf32>
    %9 = vector.broadcast %8 : vector<8x1xf32> to vector<8x256xf32>
    %10 = arith.addf %6, %9 : vector<8x256xf32>
    %cst = arith.constant 0.000000e+00 : f32
    %11 = vector.broadcast %cst : f32 to vector<8x256xf32>
    %12 = arith.maximumf %10, %11 : vector<8x256xf32>
    %c0_8 = arith.constant 0 : index
    %c0_9 = arith.constant 0 : index
    %c0_10 = arith.constant 0 : index
    %13 = vector.load %arg5[%c0_8, %c0_9, %c0_10] : memref<1x8x256xf32, #tpu.memory_space<vmem>>, vector<1x8x256xf32>
    %14 = vector.shape_cast %13 : vector<1x8x256xf32> to vector<8x256xf32>
    %15 = vector.shape_cast %12 : vector<8x256xf32> to vector<1x8x256xf32>
    tpu.vector_store %arg5[%c0_8, %c0_9, %c0_10], %15 {strides = array<i32>} : memref<1x8x256xf32, #tpu.memory_space<vmem>>, vector<1x8x256xf32>,
    return
  }
  func.func @transform_0(%arg0: i32, %arg1: i32) -> (i32, i32, i32) {
    %c0_i32 = arith.constant 0 : i32
    %c0_i32_0 = arith.constant 0 : i32
    return %arg0, %c0_i32, %arg1 : i32, i32, i32
  }
  func.func @transform_1(%arg0: i32, %arg1: i32) -> (i32, i32, i32) {
    %c0_i32 = arith.constant 0 : i32
    %c0_i32_0 = arith.constant 0 : i32
    %c0_i32_1 = arith.constant 0 : i32
    return %arg0, %c0_i32, %c0_i32_0 : i32, i32, i32
  }
  func.func @transform_2(%arg0: i32, %arg1: i32) -> (i32, i32, i32) {
    %c0_i32 = arith.constant 0 : i32
    %c0_i32_0 = arith.constant 0 : i32
    %c0_i32_1 = arith.constant 0 : i32
    return %arg0, %c0_i32, %c0_i32_0 : i32, i32, i32
  }
  func.func @transform_3(%arg0: i32, %arg1: i32) -> (i32, i32, i32) {
    %c0_i32 = arith.constant 0 : i32
    %c0_i32_0 = arith.constant 0 : i32
    return %arg0, %c0_i32, %arg1 : i32, i32, i32
  }
}

</mosaic_0001>

<llo_original>
// kernel: squeeze.3
$region0: #{squeeze.3}
  %s0 = inlined_call_operand.vmem [shape: f32[2,8], index: 0, kind: input, shape index: {}]
  %s1 = inlined_call_operand.vmem [shape: f32[2,2,4], index: 1, kind: output, shape index: {}]
  $region1: #{squeeze.3} parent=0
    #allocation0 [shape = 'u8[8192]{0}', space=vmem, size = 0x2000, scoped, tag = 'scoped mem for output reshape']
    #allocation1 [shape = 'u8[4096]{0}', space=vmem, size = 0x1000, scoped, tag = 'scoped mem for input reshape']
    %s3 = sshllo.u32 0, 2
    %v4 = vld [vmem:[%s0] sm:%s3]
    %5 = vst [vmem:[#allocation1] sm:%s3] %v4
    %v6 = vld [vmem:[#allocation1] sm:$0x3]
    %vm7 = vcmask 31744
    %8 = vst.msk [vmem:[#allocation0] ss:$8 sm:$0x3] %vm7, %v6
    %v9 = vld [vmem:[#allocation1] sm:$0x3]
    %10 = vrot.lane.b32.xlu0 %v9, 124
    %v11 = vpop.permute.xlu0 %10
    %vm12 = vcmask 31744
    %s13 = scalar_lea.vmem [#allocation0], 1
    %14 = vst.msk [vmem:[%s13] ss:$8 sm:$0x3] %vm12, %v11
    %s16 = sshllo.u32 0, 2
    %v18 = vld [vmem:[#allocation0] sm:%s16]
    %s19 = sshllo.u32 0, 2
    %20 = vst [vmem:[%s1] sm:%s19] %v18
    %s21 = scalar_lea.vmem [#allocation0], 8
    %v22 = vld [vmem:[%s21] sm:%s16]
    %s23 = sshllo.u32 0, 2
    %s24 = scalar_lea.vmem %s1, 2
    %25 = vst [vmem:[%s24] sm:%s23] %v22

// kernel: single_conv3d_block_dsc.3
$region0: #{single_conv3d_block_dsc.3}
  #allocation0 [shape = 'u32[]', space=smem, size = 0x4, offset = 0x4, fixed_abs, tag = 'smem constant byte address 0x4 - core index']
  #allocation1 [shape = 'u32[144,128]{1,0:T(1,128)}', space=vmem, size = 0x12000, scoped, tag = 'internal scratch']
  %s0 = inlined_call_operand.vmem [shape: bf16[2,8,256], index: 0, kind: input, shape index: {}]
  %s1 = inlined_call_operand.vmem [shape: f32[2,8,1], index: 1, kind: input, shape index: {}]
  %s2 = inlined_call_operand.vmem [shape: f32[2,8,1], index: 2, kind: input, shape index: {}]
  %s3 = inlined_call_operand.vmem [shape: f32[2,8,256], index: 3, kind: output, shape index: {}]
  %s4 = sld [smem:[#allocation0]]
  $region45: #{single_conv3d_block_dsc.3} parent=0
    _
  %s6 = ssub.s32 1, %s4
  %s7 = scalar_select 0, %s6, %s4
  loop: start=0, step=1, limit=4
  $region2: #{single_conv3d_block_dsc.3} parent=0 // loop_pre_header
    _
  $region3: #{single_conv3d_block_dsc.3} parent=0 // loop_header
    %s9 = sphi 0, %s13
    %p10 = scmp.ge.s32.totalorder %s9, 4
    %s16 = sphi 0, %s28
    %s17 = sphi 0, %s24
    %s18 = sphi 0, %s16
    %s19 = sphi 0, %s17
    %s20 = sphi 0, %s18
    %s21 = sphi 0, %s19
    %s33 = sphi 0, %s35
    %s36 = sphi 0, %s33
    %s37 = sphi 0, %s36
    %s53 = sphi 0, %s37
    %s59 = sphi 0, %s61
    %s62 = sphi 0, %s59
    %s63 = sphi 0, %s62
    %s79 = sphi 0, %s63
    %s85 = sphi 0, %s87
    %s88 = sphi 0, %s85
    %s89 = sphi 0, %s88
    %s105 = sphi 0, %s89
    %s113 = sphi 0, %s115
    %s116 = sphi 0, %s113
    %s117 = sphi 0, %s116
    %s133 = sphi 0, %s117
  $region4: #{single_conv3d_block_dsc.3} parent=0 // loop_header_branch
    %12 = sbr.rel (%p10) target = $region8
  $region5: #{single_conv3d_block_dsc.3} parent=0 // loop_body
    %s14 = ssub.s32 %s9, 1
    %s15 = ssub.s32 %s9, 2
    %s22 = sadd.s32 1, %s17
    %p23 = scmp.ge.s32.totalorder %s22, 1
    %s24 = scalar_select %p23, 0, %s22
    %s25 = sadd.s32 1, %s16
    %s26 = scalar_select %p23, %s25, %s16
    %p27 = scmp.ge.s32.totalorder %s26, 2
    %s28 = scalar_select %p27, 0, %s26
    %s29 = ssub.s32 %s16, %s28
    %s30 = ssub.s32 %s17, %s24
    %s31 = sor.u32 %s29, %s30
    %p32 = scmp.eq.s32.totalorder %s31, 0
    %s34 = sadd.s32 %s33, 1
    %s35 = scalar_select %p32, %s33, %s34
    %p38 = pneg %p32
    %p39 = scmp.eq.s32.totalorder %s9, 1
    %p40 = por %p38, %p39
    %p41 = scmp.ne.s32.totalorder %s33, %s36
    %p42 = scmp.eq.s32.totalorder %s9, 0
    %p43 = por %p41, %p42
    %p44 = scmp.ne.s32.totalorder %s33, %s36
    %p45 = scmp.eq.s32.totalorder %s14, 1
    %p46 = por %p44, %p45
    %p47 = scmp.ne.s32.totalorder %s36, %s37
    %p48 = scmp.eq.s32.totalorder %s14, 0
    %p49 = por %p47, %p48
    %p50 = scmp.ne.s32.totalorder %s36, %s37
    %p51 = scmp.eq.s32.totalorder %s15, 1
    %p52 = por %p50, %p51
    %p54 = scmp.ne.s32.totalorder %s37, %s53
    %p55 = scmp.eq.s32.totalorder %s15, 0
    %p56 = por %p54, %p55
    %s57 = ssub.s32 %s16, %s28
    %p58 = scmp.eq.s32.totalorder %s57, 0
    %s60 = sadd.s32 %s59, 1
    %s61 = scalar_select %p58, %s59, %s60
    %p64 = pneg %p58
    %p65 = scmp.eq.s32.totalorder %s9, 1
    %p66 = por %p64, %p65
    %p67 = scmp.ne.s32.totalorder %s59, %s62
    %p68 = scmp.eq.s32.totalorder %s9, 0
    %p69 = por %p67, %p68
    %p70 = scmp.ne.s32.totalorder %s59, %s62
    %p71 = scmp.eq.s32.totalorder %s14, 1
    %p72 = por %p70, %p71
    %p73 = scmp.ne.s32.totalorder %s62, %s63
    %p74 = scmp.eq.s32.totalorder %s14, 0
    %p75 = por %p73, %p74
    %p76 = scmp.ne.s32.totalorder %s62, %s63
    %p77 = scmp.eq.s32.totalorder %s15, 1
    %p78 = por %p76, %p77
    %p80 = scmp.ne.s32.totalorder %s63, %s79
    %p81 = scmp.eq.s32.totalorder %s15, 0
    %p82 = por %p80, %p81
    %s83 = ssub.s32 %s16, %s28
    %p84 = scmp.eq.s32.totalorder %s83, 0
    %s86 = sadd.s32 %s85, 1
    %s87 = scalar_select %p84, %s85, %s86
    %p90 = pneg %p84
    %p91 = scmp.eq.s32.totalorder %s9, 1
    %p92 = por %p90, %p91
    %p93 = scmp.ne.s32.totalorder %s85, %s88
    %p94 = scmp.eq.s32.totalorder %s9, 0
    %p95 = por %p93, %p94
    %p96 = scmp.ne.s32.totalorder %s85, %s88
    %p97 = scmp.eq.s32.totalorder %s14, 1
    %p98 = por %p96, %p97
    %p99 = scmp.ne.s32.totalorder %s88, %s89
    %p100 = scmp.eq.s32.totalorder %s14, 0
    %p101 = por %p99, %p100
    %p102 = scmp.ne.s32.totalorder %s88, %s89
    %p103 = scmp.eq.s32.totalorder %s15, 1
    %p104 = por %p102, %p103
    %p106 = scmp.ne.s32.totalorder %s89, %s105
    %p107 = scmp.eq.s32.totalorder %s15, 0
    %p108 = por %p106, %p107
    %s109 = ssub.s32 %s16, %s28
    %s110 = ssub.s32 %s17, %s24
    %s111 = sor.u32 %s109, %s110
    %p112 = scmp.eq.s32.totalorder %s111, 0
    %s114 = sadd.s32 %s113, 1
    %s115 = scalar_select %p112, %s113, %s114
    %p118 = pneg %p112
    %p119 = scmp.eq.s32.totalorder %s9, 1
    %p120 = por %p118, %p119
    %p121 = scmp.ne.s32.totalorder %s113, %s116
    %p122 = scmp.eq.s32.totalorder %s9, 0
    %p123 = por %p121, %p122
    %p124 = scmp.ne.s32.totalorder %s113, %s116
    %p125 = scmp.eq.s32.totalorder %s14, 1
    %p126 = por %p124, %p125
    %p127 = scmp.ne.s32.totalorder %s116, %s117
    %p128 = scmp.eq.s32.totalorder %s14, 0
    %p129 = por %p127, %p128
    %p130 = scmp.ne.s32.totalorder %s116, %s117
    %p131 = scmp.eq.s32.totalorder %s15, 1
    %p132 = por %p130, %p131
    %p134 = scmp.ne.s32.totalorder %s117, %s133
    %p135 = scmp.eq.s32.totalorder %s15, 0
    %p136 = por %p134, %p135
    %p137 = scmp.le.s32.totalorder 1, %s9
    %p138 = scmp.lt.s32.totalorder %s9, 3
    %p139 = pnand %p137, %p138
    %p140 = pneg %p139
    // Predicated region
    $region9: #{single_conv3d_block_dsc.3} parent=5 // pred_check
      _
    $region10: #{single_conv3d_block_dsc.3} parent=5 // pred_check_branch
      %142 = sbr.rel (%p139) target = $region12
    $region11: #{single_conv3d_block_dsc.3} parent=5 // pred_region
      %s143 = ssub.s32 %s9, 1
    $region12: #{single_conv3d_block_dsc.3} parent=5 // pred_fallthru
      _
    %p144 = scmp.lt.s32.totalorder %s9, 2
    // Predicated region
    $region13: #{single_conv3d_block_dsc.3} parent=5 // pred_check
      %p145 = pneg %p144
    $region14: #{single_conv3d_block_dsc.3} parent=5 // pred_check_branch
      %147 = sbr.rel (%p145) target = $region16
    $region15: #{single_conv3d_block_dsc.3} parent=5 // pred_region
      // Predicated region
      $region17: #{single_conv3d_block_dsc.3} parent=15 // pred_check
        %p148 = pneg %p43
      $region18: #{single_conv3d_block_dsc.3} parent=15 // pred_check_branch
        %150 = sbr.rel (%p148) target = $region20
      $region19: #{single_conv3d_block_dsc.3} parent=15 // pred_region
        %s151 = smul.u32 2, %s17
        %p152 = scmp.lt.s32.totalorder %s16, 1
        %s153 = scalar_select %p152, %s16, 1
        %p154 = scmp.lt.s32.totalorder %s151, 1
        %s155 = scalar_select %p154, %s151, 1
        %s156 = smul.addr %s153, 2
        %s157 = sadd.s32 %s155, %s156
        %s158 = smul.addr %s157, 4
        %s159 = scalar_lea.vmem %s0, %s158
        %s160 = smul.u32 2, %s17
      $region20: #{single_conv3d_block_dsc.3} parent=15 // pred_fallthru
        _
      // Predicated region
      $region21: #{single_conv3d_block_dsc.3} parent=15 // pred_check
        %p161 = pneg %p69
      $region22: #{single_conv3d_block_dsc.3} parent=15 // pred_check_branch
        %163 = sbr.rel (%p161) target = $region24
      $region23: #{single_conv3d_block_dsc.3} parent=15 // pred_region
        %p164 = scmp.lt.s32.totalorder %s16, 1
        %s165 = scalar_select %p164, %s16, 1
        %s166 = smul.addr %s165, 8
        %s167 = scalar_lea.vmem %s1, %s166
      $region24: #{single_conv3d_block_dsc.3} parent=15 // pred_fallthru
        _
      // Predicated region
      $region25: #{single_conv3d_block_dsc.3} parent=15 // pred_check
        %p168 = pneg %p95
      $region26: #{single_conv3d_block_dsc.3} parent=15 // pred_check_branch
        %170 = sbr.rel (%p168) target = $region28
      $region27: #{single_conv3d_block_dsc.3} parent=15 // pred_region
        %p171 = scmp.lt.s32.totalorder %s16, 1
        %s172 = scalar_select %p171, %s16, 1
        %s173 = smul.addr %s172, 8
        %s174 = scalar_lea.vmem %s2, %s173
      $region28: #{single_conv3d_block_dsc.3} parent=15 // pred_fallthru
        _
    $region16: #{single_conv3d_block_dsc.3} parent=5 // pred_fallthru
      _
    %p175 = scmp.le.s32.totalorder 1, %s9
    %p176 = scmp.lt.s32.totalorder %s9, 3
    %p177 = pnand %p175, %p176
    %p178 = pneg %p177
    // Predicated region
    $region29: #{single_conv3d_block_dsc.3} parent=5 // pred_check
      _
    $region30: #{single_conv3d_block_dsc.3} parent=5 // pred_check_branch
      %180 = sbr.rel (%p177) target = $region32
    $region31: #{single_conv3d_block_dsc.3} parent=5 // pred_region
      %s181 = ssub.s32 %s9, 1
      %s182 = smul.u32 2, %s19
      %p183 = scmp.lt.s32.totalorder %s18, 1
      %s184 = scalar_select %p183, %s18, 1
      %p185 = scmp.lt.s32.totalorder %s182, 1
      %s186 = scalar_select %p185, %s182, 1
      %s187 = smul.addr %s184, 2
      %s188 = sadd.s32 %s186, %s187
      %s189 = smul.addr %s188, 4
      %s190 = scalar_lea.vmem %s0, %s189
      %p191 = pneg %p49
      %p192 = pneg %p46
      %p193 = scmp.lt.s32.totalorder %s18, 1
      %s194 = scalar_select %p193, %s18, 1
      %s195 = smul.addr %s194, 8
      %s196 = scalar_lea.vmem %s1, %s195
      %p197 = pneg %p75
      %p198 = pneg %p72
      %p199 = scmp.lt.s32.totalorder %s18, 1
      %s200 = scalar_select %p199, %s18, 1
      %s201 = smul.addr %s200, 8
      %s202 = scalar_lea.vmem %s2, %s201
      %p203 = pneg %p101
      %p204 = pneg %p98
      %p205 = pneg %p129
      %p206 = pneg %p126
      %s207 = smul.u32 2, %s19
      %p208 = scmp.lt.s32.totalorder %s18, 1
      %s209 = scalar_select %p208, %s18, 1
      %p210 = scmp.lt.s32.totalorder %s207, 1
      %s211 = scalar_select %p210, %s207, 1
      %s212 = smul.addr %s209, 2
      %s213 = sadd.s32 %s211, %s212
      %s214 = smul.addr %s213, 8
      %s215 = scalar_lea.vmem %s3, %s214
      %s216 = smul.u32 2, %s19
      %p217 = scmp.lt.s32.totalorder %s18, 1
      %s218 = scalar_select %p217, %s18, 1
      %p219 = scmp.lt.s32.totalorder %s216, 1
      %s220 = scalar_select %p219, %s216, 1
      %s221 = smul.addr %s218, 2
      %s222 = sadd.s32 %s220, %s221
      %s223 = smul.addr %s222, 4
      %s224 = scalar_lea.vmem %s0, %s223
      %s225 = smul.u32 2, %s19
      %p226 = scmp.lt.s32.totalorder %s18, 1
      %s227 = scalar_select %p226, %s18, 1
      %s228 = smul.addr %s227, 8
      %s229 = scalar_lea.vmem %s1, %s228
      %p230 = scmp.lt.s32.totalorder %s18, 1
      %s231 = scalar_select %p230, %s18, 1
      %s232 = smul.addr %s231, 8
      %s233 = scalar_lea.vmem %s2, %s232
      %s234 = smul.u32 2, %s19
      %p235 = scmp.lt.s32.totalorder %s18, 1
      %s236 = scalar_select %p235, %s18, 1
      %p237 = scmp.lt.s32.totalorder %s234, 1
      %s238 = scalar_select %p237, %s234, 1
      %s239 = smul.addr %s236, 2
      %s240 = sadd.s32 %s238, %s239
      %s241 = smul.addr %s240, 8
      %s242 = scalar_lea.vmem %s3, %s241
      %s243 = smul.u32 2, %s19
      %v244 = vld [vmem:[%s224] sm:$0xff]
      %v245 = vunpack.c.l.bf16 %v244
      %v246 = vunpack.c.h.bf16 %v244
      %v247 = vld [vmem:[%s229] sm:$0xff]
      %249 = vset.pattern.permute.xlu0 0
      %250 = vperm.xlu0 %249, %v247
      %v251 = vpop.permute.xlu0 %250
      %v253 = vmul.f32 %v245, %v251
      %v254 = vmul.f32 %v246, %v251
      %v255 = vld [vmem:[%s233] sm:$0xff]
      %257 = vset.pattern.permute.xlu0 0
      %258 = vperm.xlu0 %257, %v255
      %v259 = vpop.permute.xlu0 %258
      %v261 = vadd.f32 %v253, %v259
      %v262 = vadd.f32 %v254, %v259
      %v263 = vmax.f32 %v261, 0.0
      %v264 = vmax.f32 %v262, 0.0
      %265 = vst [vmem:[%s242] sm:$0xff] %v263
      %266 = vst [vmem:[%s242 + $0x8] sm:$0xff] %v264
      %s267 = smul.u32 2, %s19
      %p268 = scmp.lt.s32.totalorder %s18, 1
      %s269 = scalar_select %p268, %s18, 1
      %p270 = scmp.lt.s32.totalorder %s267, 1
      %s271 = scalar_select %p270, %s267, 1
      %s272 = smul.addr %s269, 2
      %s273 = sadd.s32 %s271, %s272
      %s274 = smul.addr %s273, 8
      %s275 = scalar_lea.vmem %s3, %s274
      // Predicated region
      $region33: #{single_conv3d_block_dsc.3} parent=31 // pred_check
        %p276 = pneg %p126
      $region34: #{single_conv3d_block_dsc.3} parent=31 // pred_check_branch
        %278 = sbr.rel (%p276) target = $region36
      $region35: #{single_conv3d_block_dsc.3} parent=31 // pred_region
        %s279 = smul.u32 2, %s19
      $region36: #{single_conv3d_block_dsc.3} parent=31 // pred_fallthru
        _
    $region32: #{single_conv3d_block_dsc.3} parent=5 // pred_fallthru
      _
    %p280 = scmp.le.s32.totalorder 2, %s9
    // Predicated region
    $region37: #{single_conv3d_block_dsc.3} parent=5 // pred_check
      %p281 = pneg %p280
    $region38: #{single_conv3d_block_dsc.3} parent=5 // pred_check_branch
      %283 = sbr.rel (%p281) target = $region40
    $region39: #{single_conv3d_block_dsc.3} parent=5 // pred_region
      %s284 = ssub.s32 %s9, 2
      // Predicated region
      $region41: #{single_conv3d_block_dsc.3} parent=39 // pred_check
        %p285 = pneg %p132
      $region42: #{single_conv3d_block_dsc.3} parent=39 // pred_check_branch
        %287 = sbr.rel (%p285) target = $region44
      $region43: #{single_conv3d_block_dsc.3} parent=39 // pred_region
        %s288 = smul.u32 2, %s21
        %p289 = scmp.lt.s32.totalorder %s20, 1
        %s290 = scalar_select %p289, %s20, 1
        %p291 = scmp.lt.s32.totalorder %s288, 1
        %s292 = scalar_select %p291, %s288, 1
        %s293 = smul.addr %s290, 2
        %s294 = sadd.s32 %s292, %s293
        %s295 = smul.addr %s294, 8
        %s296 = scalar_lea.vmem %s3, %s295
      $region44: #{single_conv3d_block_dsc.3} parent=39 // pred_fallthru
        _
    $region40: #{single_conv3d_block_dsc.3} parent=5 // pred_fallthru
      _
  $region6: #{single_conv3d_block_dsc.3} parent=0 // loop_footer
    %s13 = sadd.s32 1, %s9
  $region7: #{single_conv3d_block_dsc.3} parent=0 // loop_footer_branch
    %8 = sbr.rel target = $region3
  $region8: #{single_conv3d_block_dsc.3} parent=0 // loop_exit
    _

// kernel: single_conv3d_block_dsc.2
$region0: #{single_conv3d_block_dsc.2}
  #allocation0 [shape = 'u32[]', space=smem, size = 0x4, offset = 0x4, fixed_abs, tag = 'smem constant byte address 0x4 - core index']
  #allocation1 [shape = 'u32[144,128]{1,0:T(1,128)}', space=vmem, size = 0x12000, scoped, tag = 'internal scratch']
  #allocation2 [shape = 'f32[8,256]{1,0:T(8,128)}', space=vmem, size = 0x2000, scoped, tag = 'scratch operand']
  %s0 = inlined_call_operand.vmem [shape: bf16[2,3,4,256], index: 0, kind: input, shape index: {}]
  %s1 = inlined_call_operand.vmem [shape: bf16[3,8,4], index: 1, kind: input, shape index: {}]
  %s2 = inlined_call_operand.vmem [shape: f32[8,1], index: 2, kind: input, shape index: {}]
  %s3 = inlined_call_operand.vmem [shape: bf16[2,8,256], index: 3, kind: output, shape index: {0}]
  %s4 = inlined_call_operand.vmem [shape: f32[2,1,8,1], index: 4, kind: output, shape index: {1}]
  %s5 = inlined_call_operand.vmem [shape: f32[2,1,8,1], index: 5, kind: output, shape index: {2}]
  %6 = xla_tuple %s3, %s4, %s5
  %s7 = sld [smem:[#allocation0]]
  $region61: #{single_conv3d_block_dsc.2} parent=0
    _
  %s9 = ssub.s32 1, %s7
  %s10 = scalar_select 0, %s9, %s7
  loop: start=0, step=1, limit=4
  $region2: #{single_conv3d_block_dsc.2} parent=0 // loop_pre_header
    _
  $region3: #{single_conv3d_block_dsc.2} parent=0 // loop_header
    %s12 = sphi 0, %s16
    %p13 = scmp.ge.s32.totalorder %s12, 4
    %s19 = sphi 0, %s31
    %s20 = sphi 0, %s27
    %s21 = sphi 0, %s19
    %s22 = sphi 0, %s20
    %s23 = sphi 0, %s21
    %s24 = sphi 0, %s22
    %s36 = sphi 0, %s38
    %s39 = sphi 0, %s36
    %s40 = sphi 0, %s39
    %s56 = sphi 0, %s40
    %s60 = sphi 0, %s60
    %s62 = sphi 0, %s60
    %s63 = sphi 0, %s62
    %s77 = sphi 0, %s63
    %s81 = sphi 0, %s81
    %s83 = sphi 0, %s81
    %s84 = sphi 0, %s83
    %s98 = sphi 0, %s84
    %s106 = sphi 0, %s108
    %s109 = sphi 0, %s106
    %s110 = sphi 0, %s109
    %s126 = sphi 0, %s110
    %s134 = sphi 0, %s136
    %s137 = sphi 0, %s134
    %s138 = sphi 0, %s137
    %s154 = sphi 0, %s138
    %s162 = sphi 0, %s164
    %s165 = sphi 0, %s162
    %s166 = sphi 0, %s165
    %s182 = sphi 0, %s166
  $region4: #{single_conv3d_block_dsc.2} parent=0 // loop_header_branch
    %15 = sbr.rel (%p13) target = $region8
  $region5: #{single_conv3d_block_dsc.2} parent=0 // loop_body
    %s17 = ssub.s32 %s12, 1
    %s18 = ssub.s32 %s12, 2
    %s25 = sadd.s32 1, %s20
    %p26 = scmp.ge.s32.totalorder %s25, 1
    %s27 = scalar_select %p26, 0, %s25
    %s28 = sadd.s32 1, %s19
    %s29 = scalar_select %p26, %s28, %s19
    %p30 = scmp.ge.s32.totalorder %s29, 2
    %s31 = scalar_select %p30, 0, %s29
    %s32 = ssub.s32 %s19, %s31
    %s33 = ssub.s32 %s20, %s27
    %s34 = sor.u32 %s32, %s33
    %p35 = scmp.eq.s32.totalorder %s34, 0
    %s37 = sadd.s32 %s36, 1
    %s38 = scalar_select %p35, %s36, %s37
    %p41 = pneg %p35
    %p42 = scmp.eq.s32.totalorder %s12, 1
    %p43 = por %p41, %p42
    %p44 = scmp.ne.s32.totalorder %s36, %s39
    %p45 = scmp.eq.s32.totalorder %s12, 0
    %p46 = por %p44, %p45
    %p47 = scmp.ne.s32.totalorder %s36, %s39
    %p48 = scmp.eq.s32.totalorder %s17, 1
    %p49 = por %p47, %p48
    %p50 = scmp.ne.s32.totalorder %s39, %s40
    %p51 = scmp.eq.s32.totalorder %s17, 0
    %p52 = por %p50, %p51
    %p53 = scmp.ne.s32.totalorder %s39, %s40
    %p54 = scmp.eq.s32.totalorder %s18, 1
    %p55 = por %p53, %p54
    %p57 = scmp.ne.s32.totalorder %s40, %s56
    %p58 = scmp.eq.s32.totalorder %s18, 0
    %p59 = por %p57, %p58
    %s61 = sadd.s32 %s60, 1
    %p64 = scmp.eq.s32.totalorder %s12, 1
    %p65 = scmp.ne.s32.totalorder %s60, %s62
    %p66 = scmp.eq.s32.totalorder %s12, 0
    %p67 = por %p65, %p66
    %p68 = scmp.ne.s32.totalorder %s60, %s62
    %p69 = scmp.eq.s32.totalorder %s17, 1
    %p70 = por %p68, %p69
    %p71 = scmp.ne.s32.totalorder %s62, %s63
    %p72 = scmp.eq.s32.totalorder %s17, 0
    %p73 = por %p71, %p72
    %p74 = scmp.ne.s32.totalorder %s62, %s63
    %p75 = scmp.eq.s32.totalorder %s18, 1
    %p76 = por %p74, %p75
    %p78 = scmp.ne.s32.totalorder %s63, %s77
    %p79 = scmp.eq.s32.totalorder %s18, 0
    %p80 = por %p78, %p79
    %s82 = sadd.s32 %s81, 1
    %p85 = scmp.eq.s32.totalorder %s12, 1
    %p86 = scmp.ne.s32.totalorder %s81, %s83
    %p87 = scmp.eq.s32.totalorder %s12, 0
    %p88 = por %p86, %p87
    %p89 = scmp.ne.s32.totalorder %s81, %s83
    %p90 = scmp.eq.s32.totalorder %s17, 1
    %p91 = por %p89, %p90
    %p92 = scmp.ne.s32.totalorder %s83, %s84
    %p93 = scmp.eq.s32.totalorder %s17, 0
    %p94 = por %p92, %p93
    %p95 = scmp.ne.s32.totalorder %s83, %s84
    %p96 = scmp.eq.s32.totalorder %s18, 1
    %p97 = por %p95, %p96
    %p99 = scmp.ne.s32.totalorder %s84, %s98
    %p100 = scmp.eq.s32.totalorder %s18, 0
    %p101 = por %p99, %p100
    %s102 = ssub.s32 %s19, %s31
    %s103 = ssub.s32 %s20, %s27
    %s104 = sor.u32 %s102, %s103
    %p105 = scmp.eq.s32.totalorder %s104, 0
    %s107 = sadd.s32 %s106, 1
    %s108 = scalar_select %p105, %s106, %s107
    %p111 = pneg %p105
    %p112 = scmp.eq.s32.totalorder %s12, 1
    %p113 = por %p111, %p112
    %p114 = scmp.ne.s32.totalorder %s106, %s109
    %p115 = scmp.eq.s32.totalorder %s12, 0
    %p116 = por %p114, %p115
    %p117 = scmp.ne.s32.totalorder %s106, %s109
    %p118 = scmp.eq.s32.totalorder %s17, 1
    %p119 = por %p117, %p118
    %p120 = scmp.ne.s32.totalorder %s109, %s110
    %p121 = scmp.eq.s32.totalorder %s17, 0
    %p122 = por %p120, %p121
    %p123 = scmp.ne.s32.totalorder %s109, %s110
    %p124 = scmp.eq.s32.totalorder %s18, 1
    %p125 = por %p123, %p124
    %p127 = scmp.ne.s32.totalorder %s110, %s126
    %p128 = scmp.eq.s32.totalorder %s18, 0
    %p129 = por %p127, %p128
    %s130 = ssub.s32 %s19, %s31
    %s131 = ssub.s32 %s20, %s27
    %s132 = sor.u32 %s130, %s131
    %p133 = scmp.eq.s32.totalorder %s132, 0
    %s135 = sadd.s32 %s134, 1
    %s136 = scalar_select %p133, %s134, %s135
    %p139 = pneg %p133
    %p140 = scmp.eq.s32.totalorder %s12, 1
    %p141 = por %p139, %p140
    %p142 = scmp.ne.s32.totalorder %s134, %s137
    %p143 = scmp.eq.s32.totalorder %s12, 0
    %p144 = por %p142, %p143
    %p145 = scmp.ne.s32.totalorder %s134, %s137
    %p146 = scmp.eq.s32.totalorder %s17, 1
    %p147 = por %p145, %p146
    %p148 = scmp.ne.s32.totalorder %s137, %s138
    %p149 = scmp.eq.s32.totalorder %s17, 0
    %p150 = por %p148, %p149
    %p151 = scmp.ne.s32.totalorder %s137, %s138
    %p152 = scmp.eq.s32.totalorder %s18, 1
    %p153 = por %p151, %p152
    %p155 = scmp.ne.s32.totalorder %s138, %s154
    %p156 = scmp.eq.s32.totalorder %s18, 0
    %p157 = por %p155, %p156
    %s158 = ssub.s32 %s19, %s31
    %s159 = ssub.s32 %s20, %s27
    %s160 = sor.u32 %s158, %s159
    %p161 = scmp.eq.s32.totalorder %s160, 0
    %s163 = sadd.s32 %s162, 1
    %s164 = scalar_select %p161, %s162, %s163
    %p167 = pneg %p161
    %p168 = scmp.eq.s32.totalorder %s12, 1
    %p169 = por %p167, %p168
    %p170 = scmp.ne.s32.totalorder %s162, %s165
    %p171 = scmp.eq.s32.totalorder %s12, 0
    %p172 = por %p170, %p171
    %p173 = scmp.ne.s32.totalorder %s162, %s165
    %p174 = scmp.eq.s32.totalorder %s17, 1
    %p175 = por %p173, %p174
    %p176 = scmp.ne.s32.totalorder %s165, %s166
    %p177 = scmp.eq.s32.totalorder %s17, 0
    %p178 = por %p176, %p177
    %p179 = scmp.ne.s32.totalorder %s165, %s166
    %p180 = scmp.eq.s32.totalorder %s18, 1
    %p181 = por %p179, %p180
    %p183 = scmp.ne.s32.totalorder %s166, %s182
    %p184 = scmp.eq.s32.totalorder %s18, 0
    %p185 = por %p183, %p184
    %p186 = scmp.le.s32.totalorder 1, %s12
    %p187 = scmp.lt.s32.totalorder %s12, 3
    %p188 = pnand %p186, %p187
    %p189 = pneg %p188
    // Predicated region
    $region9: #{single_conv3d_block_dsc.2} parent=5 // pred_check
      _
    $region10: #{single_conv3d_block_dsc.2} parent=5 // pred_check_branch
      %191 = sbr.rel (%p188) target = $region12
    $region11: #{single_conv3d_block_dsc.2} parent=5 // pred_region
      %s192 = ssub.s32 %s12, 1
      // Predicated region
      $region13: #{single_conv3d_block_dsc.2} parent=11 // pred_check
        %p193 = pneg %p73
      $region14: #{single_conv3d_block_dsc.2} parent=11 // pred_check_branch
        %195 = sbr.rel (%p193) target = $region16
      $region15: #{single_conv3d_block_dsc.2} parent=11 // pred_region
        _
      $region16: #{single_conv3d_block_dsc.2} parent=11 // pred_fallthru
        _
      // Predicated region
      $region17: #{single_conv3d_block_dsc.2} parent=11 // pred_check
        %p196 = pneg %p94
      $region18: #{single_conv3d_block_dsc.2} parent=11 // pred_check_branch
        %198 = sbr.rel (%p196) target = $region20
      $region19: #{single_conv3d_block_dsc.2} parent=11 // pred_region
        _
      $region20: #{single_conv3d_block_dsc.2} parent=11 // pred_fallthru
        _
    $region12: #{single_conv3d_block_dsc.2} parent=5 // pred_fallthru
      _
    %p199 = scmp.lt.s32.totalorder %s12, 2
    // Predicated region
    $region21: #{single_conv3d_block_dsc.2} parent=5 // pred_check
      %p200 = pneg %p199
    $region22: #{single_conv3d_block_dsc.2} parent=5 // pred_check_branch
      %202 = sbr.rel (%p200) target = $region24
    $region23: #{single_conv3d_block_dsc.2} parent=5 // pred_region
      // Predicated region
      $region25: #{single_conv3d_block_dsc.2} parent=23 // pred_check
        %p203 = pneg %p46
      $region26: #{single_conv3d_block_dsc.2} parent=23 // pred_check_branch
        %205 = sbr.rel (%p203) target = $region28
      $region27: #{single_conv3d_block_dsc.2} parent=23 // pred_region
        %s206 = smul.u32 2, %s20
        %p207 = scmp.lt.s32.totalorder %s19, 1
        %s208 = scalar_select %p207, %s19, 1
        %p209 = scmp.lt.s32.totalorder %s206, 1
        %s210 = scalar_select %p209, %s206, 1
        %s211 = smul.addr %s208, 6
        %s212 = sadd.s32 %s210, %s211
        %s213 = smul.addr %s212, 2
        %s214 = scalar_lea.vmem %s0, %s213
        %s215 = smul.u32 2, %s20
      $region28: #{single_conv3d_block_dsc.2} parent=23 // pred_fallthru
        _
    $region24: #{single_conv3d_block_dsc.2} parent=5 // pred_fallthru
      _
    %p216 = scmp.le.s32.totalorder 1, %s12
    %p217 = scmp.lt.s32.totalorder %s12, 3
    %p218 = pnand %p216, %p217
    %p219 = pneg %p218
    // Predicated region
    $region29: #{single_conv3d_block_dsc.2} parent=5 // pred_check
      _
    $region30: #{single_conv3d_block_dsc.2} parent=5 // pred_check_branch
      %221 = sbr.rel (%p218) target = $region32
    $region31: #{single_conv3d_block_dsc.2} parent=5 // pred_region
      %s222 = ssub.s32 %s12, 1
      %s223 = smul.u32 2, %s22
      %p224 = scmp.lt.s32.totalorder %s21, 1
      %s225 = scalar_select %p224, %s21, 1
      %p226 = scmp.lt.s32.totalorder %s223, 1
      %s227 = scalar_select %p226, %s223, 1
      %s228 = smul.addr %s225, 6
      %s229 = sadd.s32 %s227, %s228
      %s230 = smul.addr %s229, 2
      %s231 = scalar_lea.vmem %s0, %s230
      %p232 = pneg %p52
      %p233 = pneg %p49
      %p234 = pneg %p73
      %p235 = pneg %p70
      %p236 = pneg %p94
      %p237 = pneg %p91
      %p238 = pneg %p122
      %p239 = pneg %p119
      %s240 = smul.u32 2, %s22
      %p241 = scmp.lt.s32.totalorder %s21, 1
      %s242 = scalar_select %p241, %s21, 1
      %p243 = scmp.lt.s32.totalorder %s240, 1
      %s244 = scalar_select %p243, %s240, 1
      %s245 = smul.addr %s242, 2
      %s246 = sadd.s32 %s244, %s245
      %s247 = smul.addr %s246, 4
      %s248 = scalar_lea.vmem %s3, %s247
      %p249 = pneg %p150
      %p250 = pneg %p147
      %p251 = scmp.lt.s32.totalorder %s21, 1
      %s252 = scalar_select %p251, %s21, 1
      %p253 = scmp.lt.s32.totalorder %s22, 0
      %s254 = scalar_select %p253, %s22, 0
      %s255 = sadd.s32 %s254, %s252
      %s256 = smul.addr %s255, 8
      %s257 = scalar_lea.vmem %s4, %s256
      %p258 = pneg %p178
      %p259 = pneg %p175
      %p260 = scmp.lt.s32.totalorder %s21, 1
      %s261 = scalar_select %p260, %s21, 1
      %p262 = scmp.lt.s32.totalorder %s22, 0
      %s263 = scalar_select %p262, %s22, 0
      %s264 = sadd.s32 %s263, %s261
      %s265 = smul.addr %s264, 8
      %s266 = scalar_lea.vmem %s5, %s265
      %s267 = smul.u32 2, %s22
      %p268 = scmp.lt.s32.totalorder %s21, 1
      %s269 = scalar_select %p268, %s21, 1
      %p270 = scmp.lt.s32.totalorder %s267, 1
      %s271 = scalar_select %p270, %s267, 1
      %s272 = smul.addr %s269, 6
      %s273 = sadd.s32 %s271, %s272
      %s274 = smul.addr %s273, 2
      %s275 = scalar_lea.vmem %s0, %s274
      %s276 = smul.u32 2, %s22
      %s277 = smul.u32 2, %s22
      %p278 = scmp.lt.s32.totalorder %s21, 1
      %s279 = scalar_select %p278, %s21, 1
      %p280 = scmp.lt.s32.totalorder %s277, 1
      %s281 = scalar_select %p280, %s277, 1
      %s282 = smul.addr %s279, 2
      %s283 = sadd.s32 %s281, %s282
      %s284 = smul.addr %s283, 4
      %s285 = scalar_lea.vmem %s3, %s284
      %s286 = smul.u32 2, %s22
      %p287 = scmp.lt.s32.totalorder %s21, 1
      %s288 = scalar_select %p287, %s21, 1
      %p289 = scmp.lt.s32.totalorder %s22, 0
      %s290 = scalar_select %p289, %s22, 0
      %s291 = sadd.s32 %s290, %s288
      %s292 = smul.addr %s291, 8
      %s293 = scalar_lea.vmem %s4, %s292
      %p294 = scmp.lt.s32.totalorder %s21, 1
      %s295 = scalar_select %p294, %s21, 1
      %p296 = scmp.lt.s32.totalorder %s22, 0
      %s297 = scalar_select %p296, %s22, 0
      %s298 = sadd.s32 %s297, %s295
      %s299 = smul.addr %s298, 8
      %s300 = scalar_lea.vmem %s5, %s299
      %v302 = vld [vmem:[%s1] sm:$0xf]
      %v303 = vld [vmem:[%s275] sm:$0xf]
      %v306 = vunpack.c.l.s4 1983009808
      %v307 = vunpack.c.0.s8 %v306
      %v308 = vlaneseq
      %v309 = vshrl.u32 %v308, 7
      %v310 = vsub.s32 %v307, %v309
      %v311 = vrot.slane %v303, %v310
      %v312 = vcombine.high %v311, %v311
      %vm313 = vcmask 31744
      %v315 = vsel %vm313, %v302, 0
      %vm317 = vcmask 1041408
      %v319 = vsel %vm317, %v311, 0
      %v322 = vsel %vm317, %v312, 0
      %324 = vmatprep.subr.bf16.mxu0 %v322
      %325 = vmatpush1.bf16.msra.mxu0 %v319
      %326 = vmatprep.subr.bf16.mxu0 0
      %327 = vmatpush1.bf16.msra.mxu0 0
      %328 = vmatprep.subr.bf16.mxu0 0
      %329 = vmatpush1.bf16.msra.mxu0 0
      %330 = vmatprep.subr.bf16.mxu0 0
      %331 = vmatpush1.bf16.msra.mxu0 0
      %332 = vmatprep.subr.bf16.mxu0 0
      %333 = vmatpush1.bf16.msra.mxu0 0
      %334 = vmatprep.subr.bf16.mxu0 0
      %335 = vmatpush1.bf16.msra.mxu0 0
      %336 = vmatprep.subr.bf16.mxu0 0
      %337 = vmatpush1.bf16.msra.mxu0 0
      %338 = vmatprep.subr.bf16.mxu0 0
      %339 = vmatpush1.bf16.msra.mxu0 0
      %340 = vmatprep.subr.bf16.mxu0 0
      %341 = vmatpush1.bf16.msra.mxu0 0
      %342 = vmatprep.subr.bf16.mxu0 0
      %343 = vmatpush1.bf16.msra.mxu0 0
      %344 = vmatprep.subr.bf16.mxu0 0
      %345 = vmatpush1.bf16.msra.mxu0 0
      %346 = vmatprep.subr.bf16.mxu0 0
      %347 = vmatpush1.bf16.msra.mxu0 0
      %348 = vmatprep.subr.bf16.mxu0 0
      %349 = vmatpush1.bf16.msra.mxu0 0
      %350 = vmatprep.subr.bf16.mxu0 0
      %351 = vmatpush1.bf16.msra.mxu0 0
      %352 = vmatprep.subr.bf16.mxu0 0
      %353 = vmatpush1.bf16.msra.mxu0 0
      %354 = vmatprep.subr.bf16.mxu0 0
      %355 = vmatpush1.bf16.msra.mxu0 0
      %356 = vmatprep.mubr.bf16.mxu0 0
      %357 = vmatmul.mubr.bf16.gmra.mrb[0].mxu0 %v315
      %v358 = vpop.f32.mrb[0].mxu0
      %v359 = vadd.f32 0.0, %v358
      %v360 = vpop.f32.mrb[0].mxu0
      %v361 = vadd.f32 0.0, %v360
      %v362 = vpop.f32.mrb[0].mxu0
      %v363 = vpop.f32.mrb[0].mxu0
      %364 = vdwg.mxu0
      %365 = vst [vmem:[#allocation2] sm:$0xff] %v359
      %366 = vst [vmem:[#allocation2 + $0x8] sm:$0xff] %v361
      %v367 = vld [vmem:[#allocation2] sm:$0xff]
      %v368 = vld [vmem:[#allocation2 + $0x8] sm:$0xff]
      %s369 = scalar_lea.vmem %s1, 4
      %v370 = vld [vmem:[%s369] sm:$0xf]
      %s371 = scalar_lea.vmem %s275, 4
      %v372 = vld [vmem:[%s371] sm:$0xf]
      %v375 = vunpack.c.l.s4 1983009808
      %v376 = vunpack.c.0.s8 %v375
      %v377 = vlaneseq
      %v378 = vshrl.u32 %v377, 7
      %v379 = vsub.s32 %v376, %v378
      %v380 = vrot.slane %v372, %v379
      %v381 = vcombine.high %v380, %v380
      %v383 = vsel %vm313, %v370, 0
      %v386 = vsel %vm317, %v380, 0
      %v389 = vsel %vm317, %v381, 0
      %391 = vmatprep.subr.bf16.mxu0 %v389
      %392 = vmatpush1.bf16.msra.mxu0 %v386
      %393 = vmatprep.subr.bf16.mxu0 0
      %394 = vmatpush1.bf16.msra.mxu0 0
      %395 = vmatprep.subr.bf16.mxu0 0
      %396 = vmatpush1.bf16.msra.mxu0 0
      %397 = vmatprep.subr.bf16.mxu0 0
      %398 = vmatpush1.bf16.msra.mxu0 0
      %399 = vmatprep.subr.bf16.mxu0 0
      %400 = vmatpush1.bf16.msra.mxu0 0
      %401 = vmatprep.subr.bf16.mxu0 0
      %402 = vmatpush1.bf16.msra.mxu0 0
      %403 = vmatprep.subr.bf16.mxu0 0
      %404 = vmatpush1.bf16.msra.mxu0 0
      %405 = vmatprep.subr.bf16.mxu0 0
      %406 = vmatpush1.bf16.msra.mxu0 0
      %407 = vmatprep.subr.bf16.mxu0 0
      %408 = vmatpush1.bf16.msra.mxu0 0
      %409 = vmatprep.subr.bf16.mxu0 0
      %410 = vmatpush1.bf16.msra.mxu0 0
      %411 = vmatprep.subr.bf16.mxu0 0
      %412 = vmatpush1.bf16.msra.mxu0 0
      %413 = vmatprep.subr.bf16.mxu0 0
      %414 = vmatpush1.bf16.msra.mxu0 0
      %415 = vmatprep.subr.bf16.mxu0 0
      %416 = vmatpush1.bf16.msra.mxu0 0
      %417 = vmatprep.subr.bf16.mxu0 0
      %418 = vmatpush1.bf16.msra.mxu0 0
      %419 = vmatprep.subr.bf16.mxu0 0
      %420 = vmatpush1.bf16.msra.mxu0 0
      %421 = vmatprep.subr.bf16.mxu0 0
      %422 = vmatpush1.bf16.msra.mxu0 0
      %423 = vmatprep.mubr.bf16.mxu0 0
      %424 = vmatmul.mubr.bf16.gmra.mrb[0].mxu0 %v383
      %v425 = vpop.f32.mrb[0].mxu0
      %v426 = vadd.f32 0.0, %v425
      %v427 = vpop.f32.mrb[0].mxu0
      %v428 = vadd.f32 0.0, %v427
      %v429 = vpop.f32.mrb[0].mxu0
      %v430 = vpop.f32.mrb[0].mxu0
      %431 = vdwg.mxu0
      %v432 = vadd.f32 %v367, %v426
      %v433 = vadd.f32 %v368, %v428
      %434 = vst [vmem:[#allocation2] sm:$0xff] %v432
      %435 = vst [vmem:[#allocation2 + $0x8] sm:$0xff] %v433
      %v436 = vld [vmem:[#allocation2] sm:$0xff]
      %v437 = vld [vmem:[#allocation2 + $0x8] sm:$0xff]
      %s438 = scalar_lea.vmem %s1, 8
      %v439 = vld [vmem:[%s438] sm:$0xf]
      %s440 = scalar_lea.vmem %s275, 8
      %v441 = vld [vmem:[%s440] sm:$0xf]
      %v444 = vunpack.c.l.s4 1983009808
      %v445 = vunpack.c.0.s8 %v444
      %v446 = vlaneseq
      %v447 = vshrl.u32 %v446, 7
      %v448 = vsub.s32 %v445, %v447
      %v449 = vrot.slane %v441, %v448
      %v450 = vcombine.high %v449, %v449
      %v452 = vsel %vm313, %v439, 0
      %v455 = vsel %vm317, %v449, 0
      %v458 = vsel %vm317, %v450, 0
      %460 = vmatprep.subr.bf16.mxu0 %v458
      %461 = vmatpush1.bf16.msra.mxu0 %v455
      %462 = vmatprep.subr.bf16.mxu0 0
      %463 = vmatpush1.bf16.msra.mxu0 0
      %464 = vmatprep.subr.bf16.mxu0 0
      %465 = vmatpush1.bf16.msra.mxu0 0
      %466 = vmatprep.subr.bf16.mxu0 0
      %467 = vmatpush1.bf16.msra.mxu0 0
      %468 = vmatprep.subr.bf16.mxu0 0
      %469 = vmatpush1.bf16.msra.mxu0 0
      %470 = vmatprep.subr.bf16.mxu0 0
      %471 = vmatpush1.bf16.msra.mxu0 0
      %472 = vmatprep.subr.bf16.mxu0 0
      %473 = vmatpush1.bf16.msra.mxu0 0
      %474 = vmatprep.subr.bf16.mxu0 0
      %475 = vmatpush1.bf16.msra.mxu0 0
      %476 = vmatprep.subr.bf16.mxu0 0
      %477 = vmatpush1.bf16.msra.mxu0 0
      %478 = vmatprep.subr.bf16.mxu0 0
      %479 = vmatpush1.bf16.msra.mxu0 0
      %480 = vmatprep.subr.bf16.mxu0 0
      %481 = vmatpush1.bf16.msra.mxu0 0
      %482 = vmatprep.subr.bf16.mxu0 0
      %483 = vmatpush1.bf16.msra.mxu0 0
      %484 = vmatprep.subr.bf16.mxu0 0
      %485 = vmatpush1.bf16.msra.mxu0 0
      %486 = vmatprep.subr.bf16.mxu0 0
      %487 = vmatpush1.bf16.msra.mxu0 0
      %488 = vmatprep.subr.bf16.mxu0 0
      %489 = vmatpush1.bf16.msra.mxu0 0
      %490 = vmatprep.subr.bf16.mxu0 0
      %491 = vmatpush1.bf16.msra.mxu0 0
      %492 = vmatprep.mubr.bf16.mxu0 0
      %493 = vmatmul.mubr.bf16.gmra.mrb[0].mxu0 %v452
      %v494 = vpop.f32.mrb[0].mxu0
      %v495 = vadd.f32 0.0, %v494
      %v496 = vpop.f32.mrb[0].mxu0
      %v497 = vadd.f32 0.0, %v496
      %v498 = vpop.f32.mrb[0].mxu0
      %v499 = vpop.f32.mrb[0].mxu0
      %500 = vdwg.mxu0
      %v501 = vadd.f32 %v436, %v495
      %v502 = vadd.f32 %v437, %v497
      %503 = vst [vmem:[#allocation2] sm:$0xff] %v501
      %504 = vst [vmem:[#allocation2 + $0x8] sm:$0xff] %v502
      %v505 = vld [vmem:[#allocation2] sm:$0xff]
      %v506 = vld [vmem:[#allocation2 + $0x8] sm:$0xff]
      %v507 = vld [vmem:[%s2] sm:$0xff]
      %509 = vset.pattern.permute.xlu0 0
      %510 = vperm.xlu0 %509, %v507
      %v511 = vpop.permute.xlu0 %510
      %v513 = vadd.f32 %v505, %v511
      %v514 = vadd.f32 %v506, %v511
      %v515 = vpack.c.bf16 %v513, %v513
      %v516 = vpack.c.bf16 %v514, %v514
      %v519 = vunpack.c.l.b16 %v515
      %v520 = vunpack.c.l.b16 %v516
      %v521 = vpack.c.b16 %v520, %v519
      %523 = vst [vmem:[%s285] sm:$0xff] %v521
      %v524 = vadd.f32 %v513, %v514
      %525 = vadd.xlane.f32.xlu0 %v524
      %v526 = vpop.xlane.xlu0 %525
      %vm527 = vcmask 7168
      %528 = vst.msk [vmem:[%s293] sm:$0xff] %vm527, %v526
      %v529 = vmul.f32 %v513, %v513
      %v530 = vmul.f32 %v514, %v514
      %v531 = vadd.f32 %v529, %v530
      %532 = vadd.xlane.f32.xlu0 %v531
      %v533 = vpop.xlane.xlu0 %532
      %534 = vst.msk [vmem:[%s300] sm:$0xff] %vm527, %v533
      %s535 = smul.u32 2, %s22
      %p536 = scmp.lt.s32.totalorder %s21, 1
      %s537 = scalar_select %p536, %s21, 1
      %p538 = scmp.lt.s32.totalorder %s535, 1
      %s539 = scalar_select %p538, %s535, 1
      %s540 = smul.addr %s537, 2
      %s541 = sadd.s32 %s539, %s540
      %s542 = smul.addr %s541, 4
      %s543 = scalar_lea.vmem %s3, %s542
      %p544 = scmp.lt.s32.totalorder %s21, 1
      %s545 = scalar_select %p544, %s21, 1
      %p546 = scmp.lt.s32.totalorder %s22, 0
      %s547 = scalar_select %p546, %s22, 0
      %s548 = sadd.s32 %s547, %s545
      %s549 = smul.addr %s548, 8
      %s550 = scalar_lea.vmem %s4, %s549
      %p551 = scmp.lt.s32.totalorder %s21, 1
      %s552 = scalar_select %p551, %s21, 1
      %p553 = scmp.lt.s32.totalorder %s22, 0
      %s554 = scalar_select %p553, %s22, 0
      %s555 = sadd.s32 %s554, %s552
      %s556 = smul.addr %s555, 8
      %s557 = scalar_lea.vmem %s5, %s556
      // Predicated region
      $region33: #{single_conv3d_block_dsc.2} parent=31 // pred_check
        %p558 = pneg %p119
      $region34: #{single_conv3d_block_dsc.2} parent=31 // pred_check_branch
        %560 = sbr.rel (%p558) target = $region36
      $region35: #{single_conv3d_block_dsc.2} parent=31 // pred_region
        %s561 = smul.u32 2, %s22
      $region36: #{single_conv3d_block_dsc.2} parent=31 // pred_fallthru
        _
      // Predicated region
      $region37: #{single_conv3d_block_dsc.2} parent=31 // pred_check
        %p562 = pneg %p147
      $region38: #{single_conv3d_block_dsc.2} parent=31 // pred_check_branch
        %564 = sbr.rel (%p562) target = $region40
      $region39: #{single_conv3d_block_dsc.2} parent=31 // pred_region
        _
      $region40: #{single_conv3d_block_dsc.2} parent=31 // pred_fallthru
        _
      // Predicated region
      $region41: #{single_conv3d_block_dsc.2} parent=31 // pred_check
        %p565 = pneg %p175
      $region42: #{single_conv3d_block_dsc.2} parent=31 // pred_check_branch
        %567 = sbr.rel (%p565) target = $region44
      $region43: #{single_conv3d_block_dsc.2} parent=31 // pred_region
        _
      $region44: #{single_conv3d_block_dsc.2} parent=31 // pred_fallthru
        _
    $region32: #{single_conv3d_block_dsc.2} parent=5 // pred_fallthru
      _
    %p568 = scmp.le.s32.totalorder 2, %s12
    // Predicated region
    $region45: #{single_conv3d_block_dsc.2} parent=5 // pred_check
      %p569 = pneg %p568
    $region46: #{single_conv3d_block_dsc.2} parent=5 // pred_check_branch
      %571 = sbr.rel (%p569) target = $region48
    $region47: #{single_conv3d_block_dsc.2} parent=5 // pred_region
      %s572 = ssub.s32 %s12, 2
      // Predicated region
      $region49: #{single_conv3d_block_dsc.2} parent=47 // pred_check
        %p573 = pneg %p125
      $region50: #{single_conv3d_block_dsc.2} parent=47 // pred_check_branch
        %575 = sbr.rel (%p573) target = $region52
      $region51: #{single_conv3d_block_dsc.2} parent=47 // pred_region
        %s576 = smul.u32 2, %s24
        %p577 = scmp.lt.s32.totalorder %s23, 1
        %s578 = scalar_select %p577, %s23, 1
        %p579 = scmp.lt.s32.totalorder %s576, 1
        %s580 = scalar_select %p579, %s576, 1
        %s581 = smul.addr %s578, 2
        %s582 = sadd.s32 %s580, %s581
        %s583 = smul.addr %s582, 4
        %s584 = scalar_lea.vmem %s3, %s583
      $region52: #{single_conv3d_block_dsc.2} parent=47 // pred_fallthru
        _
      // Predicated region
      $region53: #{single_conv3d_block_dsc.2} parent=47 // pred_check
        %p585 = pneg %p153
      $region54: #{single_conv3d_block_dsc.2} parent=47 // pred_check_branch
        %587 = sbr.rel (%p585) target = $region56
      $region55: #{single_conv3d_block_dsc.2} parent=47 // pred_region
        %p588 = scmp.lt.s32.totalorder %s23, 1
        %s589 = scalar_select %p588, %s23, 1
        %p590 = scmp.lt.s32.totalorder %s24, 0
        %s591 = scalar_select %p590, %s24, 0
        %s592 = sadd.s32 %s591, %s589
        %s593 = smul.addr %s592, 8
        %s594 = scalar_lea.vmem %s4, %s593
      $region56: #{single_conv3d_block_dsc.2} parent=47 // pred_fallthru
        _
      // Predicated region
      $region57: #{single_conv3d_block_dsc.2} parent=47 // pred_check
        %p595 = pneg %p181
      $region58: #{single_conv3d_block_dsc.2} parent=47 // pred_check_branch
        %597 = sbr.rel (%p595) target = $region60
      $region59: #{single_conv3d_block_dsc.2} parent=47 // pred_region
        %p598 = scmp.lt.s32.totalorder %s23, 1
        %s599 = scalar_select %p598, %s23, 1
        %p600 = scmp.lt.s32.totalorder %s24, 0
        %s601 = scalar_select %p600, %s24, 0
        %s602 = sadd.s32 %s601, %s599
        %s603 = smul.addr %s602, 8
        %s604 = scalar_lea.vmem %s5, %s603
      $region60: #{single_conv3d_block_dsc.2} parent=47 // pred_fallthru
        _
    $region48: #{single_conv3d_block_dsc.2} parent=5 // pred_fallthru
      _
  $region6: #{single_conv3d_block_dsc.2} parent=0 // loop_footer
    %s16 = sadd.s32 1, %s12
  $region7: #{single_conv3d_block_dsc.2} parent=0 // loop_footer_branch
    %11 = sbr.rel target = $region3
  $region8: #{single_conv3d_block_dsc.2} parent=0 // loop_exit
    _

</llo_original>
